<compile_context>
chip_gen: v5e
topology: v5e:2x2
jax: 0.10.0
libtpu: 0.0.40
codegen_flags: <defaults>
</compile_context>

<pallas_src>
import functools

import jax
import jax.numpy as jnp
from jax.experimental import pallas as pl
from jax.experimental.pallas import tpu as pltpu


def _gsilu_kernel(x_ref, o_ref, *, inv_hw):
    # x_ref: (TR, HWp) tile in VMEM. Padded lanes (if any) are zero, so the
    # per-row sum is exact; inv_hw = 1 / (true H*W).
    x = x_ref[...]
    row_sum = jnp.sum(x.astype(jnp.float32), axis=-1, keepdims=True)  # (TR, 1) f32
    sig = jax.nn.sigmoid(row_sum * inv_hw)                            # f32, EUP
    # Broadcast multiply in the input dtype (bf16 stays bf16; f32 stays f32).
    o_ref[...] = (x * sig.astype(x.dtype)).astype(o_ref.dtype)


def _round_up(a, b):
    return (a + b - 1) // b * b


def gsilu(x):
    """x: (N, C, H, W) -> (N, C, H, W); y = x * sigmoid(global_avg_pool(x))."""
    N, C, H, W = x.shape
    rows = N * C
    hw = H * W
    itemsize = jnp.dtype(x.dtype).itemsize

    # Lane-dense last dim: pad H*W up to a multiple of 128.
    hw_p = _round_up(hw, 128)

    # Row tile: aim for ~2 MiB blocks (big enough to hide the ~0.35us/step
    # overhead, small enough that 2x-in + 2x-out buffers + f32 temps fit the
    # scoped VMEM budget on every generation, incl. v7x's 64 MiB / v5e's 16 MiB
    # default). Multiple of 8, capped at the (padded) row count.
    target_block_bytes = 2 * 1024 * 1024
    tr = max(8, (target_block_bytes // (hw_p * itemsize)) // 8 * 8)
    tr = min(tr, _round_up(rows, 8))
    rows_p = _round_up(rows, tr)
    # TODO(synk): for extremely large H*W (a single 8-row block > VMEM), add a
    # second "arbitrary" grid axis over hw with a per-row sum accumulator.

    block_bytes = tr * hw_p * itemsize
    # 2x double-buffered input + 2x output + f32 intermediates + headroom.
    vmem_limit = min(48 * 1024 * 1024,
                     max(16 * 1024 * 1024, 8 * block_bytes + (4 << 20)))

    x2 = x.reshape(rows, hw)
    if rows_p != rows or hw_p != hw:
        x2 = jnp.pad(x2, ((0, rows_p - rows), (0, hw_p - hw)))

    kernel = functools.partial(_gsilu_kernel, inv_hw=1.0 / float(hw))

    out = pl.pallas_call(
        kernel,
        out_shape=jax.ShapeDtypeStruct((rows_p, hw_p), x.dtype),
        grid=(pl.cdiv(rows_p, tr),),
        in_specs=[pl.BlockSpec((tr, hw_p), lambda i: (i, 0))],
        out_specs=pl.BlockSpec((tr, hw_p), lambda i: (i, 0)),
        compiler_params=pltpu.CompilerParams(
            dimension_semantics=("parallel",),
            vmem_limit_bytes=vmem_limit,
        ),
    )(x2)

    return out[:rows, :hw].reshape(N, C, H, W)


def _ref_gsilu(x):
    gap = jnp.mean(x.astype(jnp.float32), axis=(2, 3), keepdims=True)
    return (x.astype(jnp.float32) * jax.nn.sigmoid(gap)).astype(x.dtype)


if __name__ == "__main__":
    key = jax.random.PRNGKey(0)

    # Main check: nice aligned shapes (hw = 256 is already a multiple of 128).
    x = jax.random.normal(key, (2, 4, 16, 16), dtype=jnp.float32)
    y = gsilu(x)
    jax.block_until_ready(y)
    assert y.shape == x.shape
    assert jnp.allclose(y, _ref_gsilu(x), atol=1e-5, rtol=1e-5)

    # Second check: exercises row padding (N*C = 6) and lane padding (7*7 = 49).
    k2 = jax.random.split(key)[0]
    x_odd = jax.random.normal(k2, (2, 3, 7, 7), dtype=jnp.float32)
    y_odd = gsilu(x_odd)
    jax.block_until_ready(y_odd)
    assert y_odd.shape == x_odd.shape
    assert jnp.allclose(y_odd, _ref_gsilu(x_odd), atol=1e-5, rtol=1e-5)

    print("KERNEL_OK")
</pallas_src>

<mosaic_0001>
module attributes {stable_mosaic.version = 11 : i64} {
  func.func @_gsilu_kernel(%arg0: i32, %arg1: memref<8x256xf32, #tpu.memory_space<vmem>>, %arg2: memref<8x256xf32, #tpu.memory_space<vmem>>) attributes {dimension_semantics = [#tpu.dimension_semantics<parallel>], iteration_bounds = array<i64: 1>, scalar_prefetch = 0 : i64, scratch_operands = 0 : i64, tpu.core_type = #tpu.core_type<tc>, window_params = [{transform_indices = @transform_0, window_bounds = array<i64: 8, 256>}, {transform_indices = @transform_1, window_bounds = array<i64: 8, 256>}]} {
    %c0 = arith.constant 0 : index
    %c0_0 = arith.constant 0 : index
    %0 = vector.load %arg1[%c0, %c0_0] : memref<8x256xf32, #tpu.memory_space<vmem>>, vector<8x256xf32>
    %cst = arith.constant dense<0.000000e+00> : vector<8xf32>
    %1 = vector.multi_reduction <add>, %0, %cst [1] : vector<8x256xf32> to vector<8xf32>
    %2 = vector.shape_cast %1 : vector<8xf32> to vector<8x1xf32>
    %cst_1 = arith.constant 3.906250e-03 : f32
    %3 = vector.broadcast %cst_1 : f32 to vector<8x1xf32>
    %4 = arith.mulf %2, %3 : vector<8x1xf32>
    %5 = arith.negf %4 : vector<8x1xf32>
    %6 = math.exp %5 : vector<8x1xf32>
    %cst_2 = arith.constant 1.000000e+00 : f32
    %7 = vector.broadcast %cst_2 : f32 to vector<8x1xf32>
    %8 = arith.addf %7, %6 : vector<8x1xf32>
    %9 = arith.divf %7, %8 : vector<8x1xf32>
    %10 = vector.broadcast %9 : vector<8x1xf32> to vector<8x256xf32>
    %11 = arith.mulf %0, %10 : vector<8x256xf32>
    %c0_3 = arith.constant 0 : index
    %c0_4 = arith.constant 0 : index
    %12 = vector.load %arg2[%c0_3, %c0_4] : memref<8x256xf32, #tpu.memory_space<vmem>>, vector<8x256xf32>
    tpu.vector_store %arg2[%c0_3, %c0_4], %11 {strides = array<i32>} : memref<8x256xf32, #tpu.memory_space<vmem>>, vector<8x256xf32>,
    return
  }
  func.func @transform_0(%arg0: i32) -> (i32, i32) {
    %c0_i32 = arith.constant 0 : i32
    %c0_i32_0 = arith.constant 0 : i32
    return %arg0, %c0_i32 : i32, i32
  }
  func.func @transform_1(%arg0: i32) -> (i32, i32) {
    %c0_i32 = arith.constant 0 : i32
    %c0_i32_0 = arith.constant 0 : i32
    return %arg0, %c0_i32 : i32, i32
  }
}

</mosaic_0001>

<llo_original>
// kernel: tpu_custom_call.1
$region0: #{tpu_custom_call.1}
  #allocation0 [shape = 'u32[]', space=smem, size = 0x4, offset = 0x4, fixed_abs, tag = 'smem constant byte address 0x4 - core index']
  #allocation1 [shape = 'u32[72,128]{1,0:T(1,128)}', space=vmem, size = 0x9000, scoped, tag = 'internal scratch']
  %s0 = inlined_call_operand.hbm [shape: f32[8,256], index: 0, kind: input, shape index: {}]
  %s1 = inlined_call_operand.hbm [shape: f32[8,256], index: 1, kind: output, shape index: {}]
  %s2 = sld [smem:[#allocation0]]
  $region18: #{tpu_custom_call.1} parent=0
    _
  %s4 = ssub.s32 1, %s2
  %s5 = scalar_select 0, %s4, %s2
  $region1: #{tpu_custom_call.1} parent=0
    #allocation2 [shape = 'u8[8192]{0}', space=vmem, size = 0x2000, scoped, tag = 'input window, operand 0, single buffered']
    #allocation3 [shape = 's32[1]{0}', space=sflag, size = 0x4, scoped, tag = 'scoped memory for tpu_custom_call.1']
    #allocation4 [shape = 's32[1]{0}', space=sflag, size = 0x4, scoped, tag = 'scoped memory for tpu_custom_call.1']
    #allocation5 [shape = 'u8[8192]{0}', space=vmem, size = 0x2000, scoped, tag = 'output window, operand 0, single buffered']
    %6 = vsyncpa [#allocation3], 0
    %7 = vsyncpa [#allocation4], 0
    // Predicated region
    $region2: #{tpu_custom_call.1} parent=1 // pred_check
      _
    $region3: #{tpu_custom_call.1} parent=1 // pred_check_branch
      %9 = sbr.rel (0) target = $region5
    $region4: #{tpu_custom_call.1} parent=1 // pred_region
      %11 = vsyncadd [#allocation3], 0
      %s13 = sshll.u32 %s0, 4
      %s14 = int_to_ptr.hbm [resolvable:$true] %s13
      %s15 = sshll.u32 [#allocation2], 4
      %s16 = int_to_ptr.vmem [resolvable:$true] %s15
      %18 = dma.hbm_to_vmem [thread:$0]  %s14, 256, %s16, [#allocation3]
    $region5: #{tpu_custom_call.1} parent=1 // pred_fallthru
      _
    // Predicated region
    $region6: #{tpu_custom_call.1} parent=1 // pred_check
      _
    $region7: #{tpu_custom_call.1} parent=1 // pred_check_branch
      %20 = sbr.rel (0) target = $region9
    $region8: #{tpu_custom_call.1} parent=1 // pred_region
      %22 = dma.done [#allocation3], 256
    $region9: #{tpu_custom_call.1} parent=1 // pred_fallthru
      _
    %v23 = vld [vmem:[#allocation2] sm:$0xff]
    %v24 = vld [vmem:[#allocation2 + $0x8] sm:$0xff]
    %v25 = vadd.f32 %v23, %v24
    %26 = vadd.xlane.f32.xlu0 %v25
    %v27 = vpop.xlane.xlu0 %26
    %v28 = vmul.f32 %v27, 0.00390625
    %v29 = vxor.u32 %v28, 2147483648
    %v30 = vmul.f32 %v29, 1.442695
    %v31 = vpow.pop %v30
    %v32 = vadd.f32 %v31, 1.0
    %v33 = vrcp.pop %v32
    %v34 = vmul.f32 %v32, %v33
    %v35 = vsub.f32 1.0, %v34
    %v36 = vmul.f32 %v33, %v35
    %v37 = vadd.f32 %v33, %v36
    %vm38 = vweird.f32 %v32
    %vm39 = vweird.f32 %v33
    %vm40 = vmor %vm38, %vm39
    %v41 = vsel %vm40, %v33, %v37
    %v42 = vand.u32 2147483647, %v32
    %vm43 = vcmp.eq.f32.partialorder %v42, 8.507059e+37
    %v44 = vand.u32 %v32, 2147483648
    %v45 = vor.u32 1.1754944e-38, %v44
    %v46 = vsel %vm43, %v45, %v41
    %v47 = vmul.f32 1.0, %v46
    %v48 = vmul.f32 %v23, %v47
    %v49 = vmul.f32 %v24, %v47
    %50 = vst [vmem:[#allocation5] sm:$0xff] %v48
    %51 = vst [vmem:[#allocation5 + $0x8] sm:$0xff] %v49
    // Predicated region
    $region10: #{tpu_custom_call.1} parent=1 // pred_check
      _
    $region11: #{tpu_custom_call.1} parent=1 // pred_check_branch
      %53 = sbr.rel (0) target = $region13
    $region12: #{tpu_custom_call.1} parent=1 // pred_region
      %55 = vsyncadd [#allocation4], 0
      %s57 = sshll.u32 [#allocation5], 4
      %s58 = int_to_ptr.vmem [resolvable:$true] %s57
      %s59 = sshll.u32 %s1, 4
      %s60 = int_to_ptr.hbm [resolvable:$true] %s59
      %62 = dma.vmem_to_hbm [thread:$0]  %s58, 256, %s60, [#allocation4]
    $region13: #{tpu_custom_call.1} parent=1 // pred_fallthru
      _
    // Predicated region
    $region14: #{tpu_custom_call.1} parent=1 // pred_check
      _
    $region15: #{tpu_custom_call.1} parent=1 // pred_check_branch
      %64 = sbr.rel (0) target = $region17
    $region16: #{tpu_custom_call.1} parent=1 // pred_region
      %66 = dma.done [#allocation4], 256
    $region17: #{tpu_custom_call.1} parent=1 // pred_fallthru
      _
    %67 = vsyncpa [#allocation3], 1
    %68 = vsyncpa [#allocation4], 1

</llo_original>
